<compile_context>
chip_gen: v7x
topology: tpu7x:2x2x1
jax: 0.10.0
libtpu: 0.0.40
codegen_flags: <defaults>
</compile_context>

<pallas_src>
import jax
import jax.numpy as jnp
from jax.experimental import pallas as pl
from jax.experimental.pallas import tpu as pltpu


def _round_up(x: int, m: int) -> int:
    return (x + m - 1) // m * m


def _cdiv(a: int, b: int) -> int:
    return (a + b - 1) // b


def _chip_info():
    """(tensorcores_per_chip, per-core VMEM tile budget, vmem_limit_bytes)."""
    kind = ""
    try:
        kind = jax.devices()[0].device_kind.lower()
    except Exception:
        pass
    if "v7" in kind or "tpu7" in kind:
        # v7x: 64 MiB VMEM per TC, 2 TCs per chip -> size per-TC, leave headroom.
        return 2, 32 * 1024 * 1024, 48 * 1024 * 1024
    # v5e / v6e: single TC, 128 MiB physical VMEM -> raise well above scoped default.
    return 1, 64 * 1024 * 1024, 96 * 1024 * 1024


def plan_linear_head(input_size, num_classes, dtype=jnp.float32, param_dtype=None,
                     vmem_budget_bytes=None):
    """Static tiling plan; depends only on layer sizes, dtypes and the chip."""
    if param_dtype is None:
        param_dtype = dtype
    if vmem_budget_bytes is None:
        vmem_budget_bytes = _chip_info()[1]
    isz_x = jnp.dtype(dtype).itemsize
    isz_w = jnp.dtype(param_dtype).itemsize
    n_pad = _round_up(num_classes, 128)            # lane-dense output (unmasked vst)

    def tile_bytes(tm, tk, k_grid):
        b = 2 * tm * tk * isz_x                    # x tile, double-buffered
        b += 2 * tm * n_pad * isz_x                # out tile, double-buffered
        b += 2 * n_pad * tk * isz_w                # W block (+ second buffer)
        b += 2 * n_pad * isz_w                     # bias
        if k_grid > 1:
            b += tm * n_pad * 4                    # f32 accumulator scratch
        return b

    tm_ref = 256                                   # reference tile for the K decision
    if tile_bytes(tm_ref, input_size, 1) <= vmem_budget_bytes:
        tk = input_size                            # single K step: W stays resident
    else:
        # K-tiled: largest multiple-of-128 divisor of input_size that fits the
        # budget, so no K padding of x is ever needed on this path.
        tk = 0
        if input_size % 128 == 0:
            m = input_size // 128
            for d in range(m, 0, -1):
                if m % d == 0 and tile_bytes(tm_ref, 128 * d, 2) <= vmem_budget_bytes:
                    tk = 128 * d
                    break
        if tk == 0:
            tk = 512                               # rare fallback: x gets K-padded

    k_pad = _round_up(input_size, tk)
    return dict(input_size=input_size, num_classes=num_classes,
                dtype=jnp.dtype(dtype), param_dtype=jnp.dtype(param_dtype),
                n_pad=n_pad, tk=tk, k_pad=k_pad, k_grid=k_pad // tk,
                tile_bytes=tile_bytes)


def prepare_linear_head_params(w, b, plan):
    """Pad + pre-transpose the static parameters once, outside the forward.

    W (num_classes, input_size) -> (k_pad, n_pad) so the kernel runs the plain
    (M,K)@(K,N) contraction with no runtime transpose. The optional bf16
    weight cast also happens here, once.
    """
    n, k = w.shape
    w_t = jnp.pad(w, ((0, plan["n_pad"] - n), (0, plan["k_pad"] - k))).T
    w_t = jnp.asarray(w_t, plan["param_dtype"])
    b_p = jnp.pad(b, (0, plan["n_pad"] - n)).reshape(1, plan["n_pad"])
    return w_t, b_p


def _linear_head_kernel_single_k(x_ref, w_ref, b_ref, o_ref):
    """o = x @ W + b in one K step.  x:(tm,K) w:(K,n_pad) b:(1,n_pad) o:(tm,n_pad)."""
    x = x_ref[...]
    if x.dtype != w_ref.dtype:                     # bf16 weight path
        x = x.astype(w_ref.dtype)
    acc = jnp.dot(x, w_ref[...], preferred_element_type=jnp.float32)
    o_ref[...] = (acc + b_ref[...].astype(jnp.float32)).astype(o_ref.dtype)


def _linear_head_kernel_k_tiled(x_ref, w_ref, b_ref, o_ref, acc_ref):
    """K-tiled y = x @ W + b with an f32 accumulator resident across the K axis."""
    k = pl.program_id(1)

    @pl.when(k == 0)
    def _():
        # Fold the bias into the accumulator init (the init write happens anyway).
        acc_ref[...] = jnp.broadcast_to(b_ref[...].astype(jnp.float32), acc_ref.shape)

    x = x_ref[...]
    if x.dtype != w_ref.dtype:
        x = x.astype(w_ref.dtype)
    acc_ref[...] += jnp.dot(x, w_ref[...], preferred_element_type=jnp.float32)

    @pl.when(k == pl.num_programs(1) - 1)
    def _():
        o_ref[...] = acc_ref[...].astype(o_ref.dtype)


def linear_head_forward(x, w_t, b_p, plan, *, slice_logits=True):
    """Eval-mode forward of LinearClassificationHead: logits = x @ W^T + b.

    x   : (batch, input_size)
    w_t : (k_pad, n_pad)  from prepare_linear_head_params (pre-transposed)
    b_p : (1, n_pad)
    returns (batch, num_classes) if slice_logits else lane-padded (batch, n_pad).
    """
    # TODO(synk): training-mode dropout (random mask + 1/(1-p) scaling) is not
    # implemented; this forward matches eval/inference where nn.Dropout is identity.
    batch, input_size = x.shape
    assert input_size == plan["input_size"]
    tk, k_pad, k_grid, n_pad = plan["tk"], plan["k_pad"], plan["k_grid"], plan["n_pad"]
    isz_x = jnp.dtype(x.dtype).itemsize
    num_tc, budget, vmem_limit = _chip_info()
    tile_bytes = plan["tile_bytes"]

    if k_pad != input_size:
        # Rare fallback (no multiple-of-128 divisor of input_size fits):
        # zero-pad K so the padded columns contribute exactly 0.
        x = jnp.pad(x, ((0, 0), (0, k_pad - input_size)))

    # --- batch tile: largest that fits the budget, then balanced over batch ---
    sub = 8 if isz_x >= 4 else 16                  # sublane multiple (f32 / bf16)
    tm_max = sub
    for cand in (2048, 1024, 512, 256, 128, 64, 32, 16, 8):
        if cand % sub == 0 and tile_bytes(cand, tk, k_grid) <= budget:
            tm_max = cand
            break
    n_tiles = _cdiv(batch, tm_max)
    if num_tc >= 2 and n_tiles < 2 and batch > sub:
        n_tiles = 2                                # v7x only: feed both TensorCores
    tm = min(_round_up(_cdiv(batch, n_tiles), sub), _round_up(batch, sub))
    grid_m = _cdiv(batch, tm)
    # Ragged last batch tile: no jnp.pad of x — out-of-range rows are read as
    # undefined values that only feed output rows discarded on write.

    w_isz = jnp.dtype(w_t.dtype).itemsize
    cost = pl.CostEstimate(
        flops=2 * batch * k_pad * n_pad,
        transcendentals=0,
        bytes_accessed=(batch * k_pad * isz_x + batch * n_pad * isz_x
                        + (grid_m if k_grid > 1 else 1) * k_pad * n_pad * w_isz
                        + n_pad * jnp.dtype(b_p.dtype).itemsize),
    )
    compiler_params = pltpu.CompilerParams(
        dimension_semantics=("parallel",) if k_grid == 1 else ("parallel", "arbitrary"),
        vmem_limit_bytes=vmem_limit,
    )
    out_shape = jax.ShapeDtypeStruct((batch, n_pad), x.dtype)

    if k_grid == 1:
        # Single K step: constant index maps keep W / bias resident across all
        # batch tiles; no accumulator scratch and no init/finalize passes.
        out = pl.pallas_call(
            _linear_head_kernel_single_k,
            out_shape=out_shape,
            grid_spec=pltpu.PrefetchScalarGridSpec(
                num_scalar_prefetch=0,
                grid=(grid_m,),
                in_specs=[
                    pl.BlockSpec((tm, k_pad), lambda i: (i, 0)),
                    pl.BlockSpec((k_pad, n_pad), lambda i: (0, 0)),
                    pl.BlockSpec((1, n_pad), lambda i: (0, 0)),
                ],
                out_specs=pl.BlockSpec((tm, n_pad), lambda i: (i, 0)),
            ),
            compiler_params=compiler_params,
            cost_estimate=cost,
        )(x, w_t, b_p)
    else:
        out = pl.pallas_call(
            _linear_head_kernel_k_tiled,
            out_shape=out_shape,
            grid_spec=pltpu.PrefetchScalarGridSpec(
                num_scalar_prefetch=0,
                grid=(grid_m, k_grid),
                in_specs=[
                    pl.BlockSpec((tm, tk), lambda i, k: (i, k)),
                    pl.BlockSpec((tk, n_pad), lambda i, k: (k, 0)),
                    pl.BlockSpec((1, n_pad), lambda i, k: (0, 0)),
                ],
                out_specs=pl.BlockSpec((tm, n_pad), lambda i, k: (i, 0)),
                scratch_shapes=[pltpu.VMEM((tm, n_pad), jnp.float32)],
            ),
            compiler_params=compiler_params,
            cost_estimate=cost,
        )(x, w_t, b_p)

    if slice_logits and n_pad != plan["num_classes"]:
        # NOTE: the lane slice materializes a copy; consumers that can take
        # lane-padded logits should pass slice_logits=False.
        out = out[:, :plan["num_classes"]]
    return out


def init_linear_head_params(key, input_size, num_classes, dtype=jnp.float32):
    """nn.Linear default init: U(-1/sqrt(fan_in), 1/sqrt(fan_in))."""
    kw, kb = jax.random.split(key)
    bound = 1.0 / jnp.sqrt(jnp.asarray(input_size, dtype))
    w = jax.random.uniform(kw, (num_classes, input_size), dtype, -bound, bound)
    b = jax.random.uniform(kb, (num_classes,), dtype, -bound, bound)
    return w, b


if __name__ == "__main__":
    key = jax.random.PRNGKey(0)
    k_x, k_p = jax.random.split(key)

    batch, input_size, num_classes = 8, 32, 16
    x = jax.random.normal(k_x, (batch, input_size), jnp.float32)
    w, b = init_linear_head_params(k_p, input_size, num_classes)

    plan = plan_linear_head(input_size, num_classes, x.dtype)
    w_t, b_p = prepare_linear_head_params(w, b, plan)   # once, offline (static params)

    out = linear_head_forward(x, w_t, b_p, plan)
    out = jax.block_until_ready(out)

    # Reference check against plain JAX (same eval-mode semantics).
    ref = x @ w.T + b
    assert out.shape == (batch, num_classes)
    assert jnp.allclose(out, ref, atol=1e-5, rtol=1e-5)

    print("KERNEL_OK")
</pallas_src>

<mosaic_0001>
module attributes {stable_mosaic.version = 11 : i64} {
  func.func @_linear_head_kernel_single_k(%arg0: i32, %arg1: memref<8x32xf32, #tpu.memory_space<vmem>>, %arg2: memref<32x128xf32, #tpu.memory_space<vmem>>, %arg3: memref<1x128xf32, #tpu.memory_space<vmem>>, %arg4: memref<8x128xf32, #tpu.memory_space<vmem>>) attributes {dimension_semantics = [#tpu.dimension_semantics<parallel>], iteration_bounds = array<i64: 1>, scalar_prefetch = 0 : i64, scratch_operands = 0 : i64, tpu.core_type = #tpu.core_type<tc>, window_params = [{transform_indices = @transform_0, window_bounds = array<i64: 8, 32>}, {pipeline_mode = #tpu.pipeline_mode<synchronous>, transform_indices = @transform_1, window_bounds = array<i64: 32, 128>}, {pipeline_mode = #tpu.pipeline_mode<synchronous>, transform_indices = @transform_2, window_bounds = array<i64: 1, 128>}, {transform_indices = @transform_3, window_bounds = array<i64: 8, 128>}]} {
    %c0 = arith.constant 0 : index
    %c0_0 = arith.constant 0 : index
    %0 = vector.load %arg1[%c0, %c0_0] : memref<8x32xf32, #tpu.memory_space<vmem>>, vector<8x32xf32>
    %c0_1 = arith.constant 0 : index
    %c0_2 = arith.constant 0 : index
    %1 = vector.load %arg2[%c0_1, %c0_2] : memref<32x128xf32, #tpu.memory_space<vmem>>, vector<32x128xf32>
    %cst = arith.constant dense<0.000000e+00> : vector<8x128xf32>
    %2 = tpu.matmul %0, %1, %cst {dimension_numbers = #tpu.dot_dimension_numbers<[1], [0], [0], [1], [0, 0, 1, 1], [], []>} : vector<8x32xf32>, vector<32x128xf32>, vector<8x128xf32> -> vector<8x128xf32>
    %c0_3 = arith.constant 0 : index
    %c0_4 = arith.constant 0 : index
    %3 = vector.load %arg3[%c0_3, %c0_4] : memref<1x128xf32, #tpu.memory_space<vmem>>, vector<1x128xf32>
    %4 = vector.broadcast %3 : vector<1x128xf32> to vector<8x128xf32>
    %5 = arith.addf %2, %4 : vector<8x128xf32>
    %c0_5 = arith.constant 0 : index
    %c0_6 = arith.constant 0 : index
    %6 = vector.load %arg4[%c0_5, %c0_6] : memref<8x128xf32, #tpu.memory_space<vmem>>, vector<8x128xf32>
    tpu.vector_store %arg4[%c0_5, %c0_6], %5 {strides = array<i32>} : memref<8x128xf32, #tpu.memory_space<vmem>>, vector<8x128xf32>,
    return
  }
  func.func @transform_0(%arg0: i32) -> (i32, i32) {
    %c0_i32 = arith.constant 0 : i32
    %c0_i32_0 = arith.constant 0 : i32
    return %arg0, %c0_i32 : i32, i32
  }
  func.func @transform_1(%arg0: i32) -> (i32, i32) {
    %c0_i32 = arith.constant 0 : i32
    %c0_i32_0 = arith.constant 0 : i32
    %c0_i32_1 = arith.constant 0 : i32
    return %c0_i32, %c0_i32_0 : i32, i32
  }
  func.func @transform_2(%arg0: i32) -> (i32, i32) {
    %c0_i32 = arith.constant 0 : i32
    %c0_i32_0 = arith.constant 0 : i32
    %c0_i32_1 = arith.constant 0 : i32
    return %c0_i32, %c0_i32_0 : i32, i32
  }
  func.func @transform_3(%arg0: i32) -> (i32, i32) {
    %c0_i32 = arith.constant 0 : i32
    %c0_i32_0 = arith.constant 0 : i32
    return %arg0, %c0_i32 : i32, i32
  }
}

</mosaic_0001>

<llo_original>
// kernel: tpu_custom_call.1
$region0: #{tpu_custom_call.1}
  #allocation0 [shape = 'u32[]', space=smem, size = 0x4, offset = 0x4, fixed_abs, tag = 'smem constant byte address 0x4 - core index']
  #allocation1 [shape = 'u32[144,128]{1,0:T(1,128)}', space=vmem, size = 0x12000, scoped, tag = 'internal scratch']
  %s0 = inlined_call_operand.hbm [shape: f32[8,32], index: 0, kind: input, shape index: {}]
  %s1 = inlined_call_operand.hbm [shape: f32[32,128], index: 1, kind: input, shape index: {}]
  %s2 = inlined_call_operand.hbm [shape: f32[1,128], index: 2, kind: input, shape index: {}]
  %s3 = inlined_call_operand.hbm [shape: f32[8,128], index: 3, kind: output, shape index: {}]
  %s4 = sld [smem:[#allocation0]]
  $region34: #{tpu_custom_call.1} parent=0
    _
  %s6 = ssub.s32 1, %s4
  %s7 = scalar_select 0, %s6, %s4
  $region1: #{tpu_custom_call.1} parent=0
    #allocation2 [shape = 'u8[4096]{0}', space=vmem, size = 0x1000, scoped, tag = 'input window, operand 0, single buffered']
    #allocation3 [shape = 's32[1]{0}', space=sflag, size = 0x4, scoped, tag = 'scoped memory for tpu_custom_call.1']
    #allocation4 [shape = 's32[1]{0}', space=sflag, size = 0x4, scoped, tag = 'scoped memory for tpu_custom_call.1']
    #allocation5 [shape = 'u8[16384]{0}', space=vmem, size = 0x4000, scoped, tag = 'input window, operand 1, single buffered']
    #allocation6 [shape = 's32[1]{0}', space=sflag, size = 0x4, scoped, tag = 'scoped memory for tpu_custom_call.1']
    #allocation7 [shape = 'u8[512]{0}', space=vmem, size = 0x400, scoped, tag = 'input window, operand 2, single buffered']
    #allocation8 [shape = 'u8[4096]{0}', space=vmem, size = 0x1000, scoped, tag = 'output window, operand 0, single buffered']
    %8 = vsyncpa [#allocation3], 0
    %9 = vsyncpa [#allocation6], 0
    %10 = vsyncpa [#allocation4], 0
    // Predicated region
    $region2: #{tpu_custom_call.1} parent=1 // pred_check
      _
    $region3: #{tpu_custom_call.1} parent=1 // pred_check_branch
      %12 = sbr.rel (0) target = $region5
    $region4: #{tpu_custom_call.1} parent=1 // pred_region
      %s14 = ssub.s32 128, 128
      %15 = vsyncadd [#allocation3], %s14
      %s17 = sshll.u32 [#allocation2], 4
      %s18 = int_to_ptr.vmem [resolvable:$true] %s17
      %20 = dma.hbm_to_vmem [thread:$0]  %s0, 128, %s18, [#allocation3]
    $region5: #{tpu_custom_call.1} parent=1 // pred_fallthru
      _
    // Predicated region
    $region6: #{tpu_custom_call.1} parent=1 // pred_check
      _
    $region7: #{tpu_custom_call.1} parent=1 // pred_check_branch
      %22 = sbr.rel (0) target = $region9
    $region8: #{tpu_custom_call.1} parent=1 // pred_region
      %s24 = ssub.s32 512, 512
      %25 = vsyncadd [#allocation6], %s24
      %s26 = sshll.u32 [#allocation5], 4
      %s27 = int_to_ptr.vmem [resolvable:$true] %s26
      %32 = dma.hbm_to_vmem [thread:$0]  %s1, 512, %s27, [#allocation6], 128, 128, 8
    $region9: #{tpu_custom_call.1} parent=1 // pred_fallthru
      _
    // Predicated region
    $region10: #{tpu_custom_call.1} parent=1 // pred_check
      _
    $region11: #{tpu_custom_call.1} parent=1 // pred_check_branch
      %34 = sbr.rel (0) target = $region13
    $region12: #{tpu_custom_call.1} parent=1 // pred_region
      %s36 = ssub.s32 16, 16
      %37 = vsyncadd [#allocation6], %s36
      %s39 = sshll.u32 [#allocation7], 4
      %s40 = int_to_ptr.vmem [resolvable:$true] %s39
      %42 = dma.hbm_to_vmem [thread:$0]  %s2, 16, %s40, [#allocation6]
    $region13: #{tpu_custom_call.1} parent=1 // pred_fallthru
      _
    // Predicated region
    $region14: #{tpu_custom_call.1} parent=1 // pred_check
      _
    $region15: #{tpu_custom_call.1} parent=1 // pred_check_branch
      %44 = sbr.rel (0) target = $region17
    $region16: #{tpu_custom_call.1} parent=1 // pred_region
      %45 = dma.done [#allocation3], 128
    $region17: #{tpu_custom_call.1} parent=1 // pred_fallthru
      _
    // Predicated region
    $region18: #{tpu_custom_call.1} parent=1 // pred_check
      _
    $region19: #{tpu_custom_call.1} parent=1 // pred_check_branch
      %47 = sbr.rel (0) target = $region21
    $region20: #{tpu_custom_call.1} parent=1 // pred_region
      %48 = dma.done [#allocation6], 512
    $region21: #{tpu_custom_call.1} parent=1 // pred_fallthru
      _
    // Predicated region
    $region22: #{tpu_custom_call.1} parent=1 // pred_check
      _
    $region23: #{tpu_custom_call.1} parent=1 // pred_check_branch
      %50 = sbr.rel (0) target = $region25
    $region24: #{tpu_custom_call.1} parent=1 // pred_region
      %51 = dma.done [#allocation6], 16
    $region25: #{tpu_custom_call.1} parent=1 // pred_fallthru
      _
    %v52 = vld [vmem:[#allocation2] sm:$0xff]
    %v53 = vld [vmem:[#allocation5] sm:$0xff]
    %v54 = vld [vmem:[#allocation5 + $0x8] sm:$0xff]
    %v55 = vld [vmem:[#allocation5 + $0x10] sm:$0xff]
    %v56 = vld [vmem:[#allocation5 + $0x18] sm:$0xff]
    %v57 = vld [vmem:[#allocation7] sm:$0x1]
    %v59 = vlaneseq
    %v60 = vshrl.u32 %v59, 7
    %v61 = vsub.s32 0, %v60
    %v62 = vrot.slane %v57, %v61
    %vm64 = vcmask 261120
    %v66 = vsel %vm64, %v52, 0
    %68 = vmatprep.subr.mxu0 0.0
    %69 = vmatpush1.msra.mxu0 %v53
    %70 = vmatprep.subr.mxu0 0.0
    %71 = vmatpush1.msra.mxu0 %v54
    %72 = vmatprep.subr.mxu0 0.0
    %73 = vmatpush1.msra.mxu0 %v55
    %74 = vmatprep.subr.mxu0 0.0
    %75 = vmatpush1.msra.mxu0 %v56
    %76 = vmatprep.subr.mxu0 0.0
    %77 = vmatpush1.msra.mxu0 0.0
    %78 = vmatprep.subr.mxu0 0.0
    %79 = vmatpush1.msra.mxu0 0.0
    %80 = vmatprep.subr.mxu0 0.0
    %81 = vmatpush1.msra.mxu0 0.0
    %82 = vmatprep.subr.mxu0 0.0
    %83 = vmatpush1.msra.mxu0 0.0
    %84 = vmatprep.subr.mxu0 0.0
    %85 = vmatpush1.msra.mxu0 0.0
    %86 = vmatprep.subr.mxu0 0.0
    %87 = vmatpush1.msra.mxu0 0.0
    %88 = vmatprep.subr.mxu0 0.0
    %89 = vmatpush1.msra.mxu0 0.0
    %90 = vmatprep.subr.mxu0 0.0
    %91 = vmatpush1.msra.mxu0 0.0
    %92 = vmatprep.subr.mxu0 0.0
    %93 = vmatpush1.msra.mxu0 0.0
    %94 = vmatprep.subr.mxu0 0.0
    %95 = vmatpush1.msra.mxu0 0.0
    %96 = vmatprep.subr.mxu0 0.0
    %97 = vmatpush1.msra.mxu0 0.0
    %98 = vmatprep.subr.mxu0 0.0
    %99 = vmatpush1.msra.mxu0 0.0
    %100 = vmatprep.subr.mxu0 0.0
    %101 = vmatpush1.msra.mxu0 0.0
    %102 = vmatprep.subr.mxu0 0.0
    %103 = vmatpush1.msra.mxu0 0.0
    %104 = vmatprep.subr.mxu0 0.0
    %105 = vmatpush1.msra.mxu0 0.0
    %106 = vmatprep.subr.mxu0 0.0
    %107 = vmatpush1.msra.mxu0 0.0
    %108 = vmatprep.subr.mxu0 0.0
    %109 = vmatpush1.msra.mxu0 0.0
    %110 = vmatprep.subr.mxu0 0.0
    %111 = vmatpush1.msra.mxu0 0.0
    %112 = vmatprep.subr.mxu0 0.0
    %113 = vmatpush1.msra.mxu0 0.0
    %114 = vmatprep.subr.mxu0 0.0
    %115 = vmatpush1.msra.mxu0 0.0
    %116 = vmatprep.subr.mxu0 0.0
    %117 = vmatpush1.msra.mxu0 0.0
    %118 = vmatprep.subr.mxu0 0.0
    %119 = vmatpush1.msra.mxu0 0.0
    %120 = vmatprep.subr.mxu0 0.0
    %121 = vmatpush1.msra.mxu0 0.0
    %122 = vmatprep.subr.mxu0 0.0
    %123 = vmatpush1.msra.mxu0 0.0
    %124 = vmatprep.subr.mxu0 0.0
    %125 = vmatpush1.msra.mxu0 0.0
    %126 = vmatprep.subr.mxu0 0.0
    %127 = vmatpush1.msra.mxu0 0.0
    %128 = vmatprep.subr.mxu0 0.0
    %129 = vmatpush1.msra.mxu0 0.0
    %130 = vmatprep.subr.mxu0 0.0
    %131 = vmatpush1.msra.mxu0 0.0
    %132 = vmatprep.mubr.f32.mxu0 0.0
    %133 = vmatmul.mubr.f32.gmra.mrb[0].mxu0 %v66
    %v134 = vpop.f32.mrb[0].mxu0
    %v135 = vadd.f32 %v62, %v134
    %v136 = vpop.f32.mrb[0].mxu0
    %137 = vdwg.mxu0
    %138 = vst [vmem:[#allocation8] sm:$0xff] %v135
    // Predicated region
    $region26: #{tpu_custom_call.1} parent=1 // pred_check
      _
    $region27: #{tpu_custom_call.1} parent=1 // pred_check_branch
      %140 = sbr.rel (0) target = $region29
    $region28: #{tpu_custom_call.1} parent=1 // pred_region
      %s142 = ssub.s32 128, 128
      %143 = vsyncadd [#allocation4], %s142
      %s145 = sshll.u32 [#allocation8], 4
      %s146 = int_to_ptr.vmem [resolvable:$true] %s145
      %148 = dma.vmem_to_hbm [thread:$0]  %s146, 128, %s3, [#allocation4]
    $region29: #{tpu_custom_call.1} parent=1 // pred_fallthru
      _
    // Predicated region
    $region30: #{tpu_custom_call.1} parent=1 // pred_check
      _
    $region31: #{tpu_custom_call.1} parent=1 // pred_check_branch
      %150 = sbr.rel (0) target = $region33
    $region32: #{tpu_custom_call.1} parent=1 // pred_region
      %151 = dma.done [#allocation4], 128
    $region33: #{tpu_custom_call.1} parent=1 // pred_fallthru
      _
    %152 = vsyncpa [#allocation3], 1
    %153 = vsyncpa [#allocation6], 1
    %154 = vsyncpa [#allocation4], 1

</llo_original>
